<compile_context>
chip_gen: v5e
topology: v5e:2x2
jax: 0.10.0
libtpu: 0.0.40
codegen_flags: <defaults>
</compile_context>

<pallas_src>
import jax
import jax.numpy as jnp
from jax import lax
from jax.experimental import pallas as pl
from jax.experimental.pallas import tpu as pltpu


# ----------------------------------------------------------------------------
# Kernels
# ----------------------------------------------------------------------------
def _resident_kernel(x_ref, w_ref, b_ref, o_ref):
    # x_ref: (TB, K) x-native dtype   w_ref: (K, N) compute dtype
    # b_ref: (1, N) f32               o_ref: (TB, N) f32
    x = x_ref[...].astype(w_ref.dtype)        # in-kernel cast: free VPU filler
    o_ref[...] = (
        jnp.dot(x, w_ref[...], preferred_element_type=jnp.float32) + b_ref[...]
    )


def _make_ktiled_kernel(K, tile_k, needs_mask):
    """Reduction over K tiles; output block stays resident across the k axis."""

    def kernel(x_ref, w_ref, b_ref, o_ref):
        k = pl.program_id(1)

        @pl.when(k == 0)
        def _init():
            o_ref[...] = jnp.zeros_like(o_ref)

        x = x_ref[...]
        w = w_ref[...]
        if needs_mask:
            # Edge K block: zero both x columns and W rows past K so garbage
            # (possibly NaN) in the padded region can never contribute.
            base = k * tile_k
            col = lax.broadcasted_iota(jnp.int32, (1, tile_k), 1)
            x = jnp.where(base + col < K, x, jnp.zeros((), x.dtype))
            row = lax.broadcasted_iota(jnp.int32, (tile_k, 1), 0)
            w = jnp.where(base + row < K, w, jnp.zeros((), w.dtype))

        o_ref[...] += jnp.dot(
            x.astype(w.dtype), w, preferred_element_type=jnp.float32
        )

        @pl.when(k == pl.num_programs(1) - 1)
        def _finalize():
            o_ref[...] += b_ref[...]

    return kernel


# ----------------------------------------------------------------------------
# One-time parameter preparation (NOT on the forward path)
# ----------------------------------------------------------------------------
def prepare_params(weights, biases, num_concepts, x_dim, num_hidden_concept,
                   compute_dtype=jnp.float32):
    """Dense zero-masked weight matrix (K, N) and bias (1, N).

    For i < num_concepts the slots belonging to concept i are zeroed (that
    concept is excluded from its own predictor, matching
    torch.cat([x[:, :i], x[:, i+1:]], dim=1)). No lane padding: the kernel
    emits the true (B, N) output, padding only costs extra HBM writeback.
    """
    C, D = num_concepts, x_dim
    N = C + num_hidden_concept

    cols = []
    for i in range(N):
        w_i = jnp.asarray(weights[i], jnp.float32)
        if i < C:
            w_full = jnp.concatenate(
                [w_i[: i * D], jnp.zeros((D,), jnp.float32), w_i[i * D:]]
            )
        else:
            w_full = w_i
        cols.append(w_full)
    W = jnp.stack(cols, axis=1).astype(compute_dtype)            # (C*D, N)

    b = jnp.stack([jnp.asarray(bi, jnp.float32).reshape(()) for bi in biases])
    b = b[None, :]                                               # (1, N) f32
    return W, b, N


# ----------------------------------------------------------------------------
# VMEM budgeting helpers
# ----------------------------------------------------------------------------
def _round_up(v, m):
    return ((v + m - 1) // m) * m


def _round_down_mult(v, m):
    return (v // m) * m


def _vmem_capacity_bytes():
    try:
        info = pltpu.get_tpu_info()
        cap = getattr(info, "vmem_capacity_bytes", None)
        if cap:
            return int(cap)
    except Exception:
        pass
    return 64 * 1024 * 1024   # conservative fallback (v7x per-TC VMEM)


# ----------------------------------------------------------------------------
# Forward (hot path: reshape + one tiled pallas_call)
# ----------------------------------------------------------------------------
def concept_pred_forward(x, W, b, *, tile_b=None, tile_k=None,
                         force_k_tiling=False):
    """x: (batch, num_concepts, embed_dim). Returns squeezed (batch, N) logits."""
    B, C, D = x.shape
    K = C * D
    Kw, N = W.shape
    assert Kw == K, (Kw, K)

    # Hot path: reshape only. x stays in its HBM-native dtype; any narrowing
    # cast (bf16 W path) happens inside the kernel right before the dot.
    x_flat = x.reshape(B, K)
    x_isz = x_flat.dtype.itemsize
    w_isz = jnp.dtype(W.dtype).itemsize

    vmem_cap = _vmem_capacity_bytes()
    budget = int(vmem_cap * 0.85)        # ~108 MiB on v5e/v6e, ~54 MiB on v7x
    out_row = N * 4
    b_bytes = N * 4
    w_bytes = K * N * w_isz

    # K-tiled reduction when a (conservatively double-buffered) resident W
    # would eat more than ~1/3 of the per-core VMEM budget (v7x-relevant).
    use_k = force_k_tiling or (2 * w_bytes > budget // 3)
    if K < 128:
        use_k = False   # lane constraint on K tiles; W is tiny anyway.

    def pick_tile_b(per_row_bytes, reserved_bytes, x_cols):
        remaining = max(budget - reserved_bytes, 8 * per_row_bytes)
        tb = remaining // per_row_bytes
        # Soft cap: one x buffer <= ~16 MiB (amortizes the ~0.35us/step
        # overhead to a few % without pathological per-step DMA latency).
        tb = min(tb, max(8, (16 * 1024 * 1024) // (x_cols * x_isz)))
        if tile_b is not None:
            tb = tile_b
        if tb >= B:
            return B
        return max(8, (tb // 8) * 8)

    cost = pl.CostEstimate(
        flops=2 * B * K * N,
        transcendentals=0,
        bytes_accessed=int(B * K * x_isz + w_bytes + b_bytes + B * out_row),
    )

    if not use_k:
        # ------------------------- resident-W path -------------------------
        tb = pick_tile_b(2 * (K * x_isz + out_row), 2 * w_bytes + 2 * b_bytes, K)
        grid = (pl.cdiv(B, tb),)
        exact = (2 * tb * K * x_isz + 2 * w_bytes + 2 * b_bytes
                 + 2 * tb * out_row)
        vmem_limit = int(min(max(exact + 4 * 1024 * 1024, 32 * 1024 * 1024),
                             int(vmem_cap * 0.9)))

        out = pl.pallas_call(
            _resident_kernel,
            out_shape=jax.ShapeDtypeStruct((B, N), jnp.float32),
            grid=grid,
            in_specs=[
                pl.BlockSpec((tb, K), lambda i: (i, 0)),   # x: batch-tiled, pipelined
                pl.BlockSpec((K, N), lambda i: (0, 0)),    # W: resident
                pl.BlockSpec((1, N), lambda i: (0, 0)),    # bias: resident
            ],
            out_specs=pl.BlockSpec((tb, N), lambda i: (i, 0)),
            compiler_params=pltpu.CompilerParams(
                # TODO(synk): verify "parallel" shards the batch axis across both
                # v7x TensorCores; if not, switch to pltpu.CORE_PARALLEL there.
                dimension_semantics=("parallel",),
                vmem_limit_bytes=vmem_limit,
            ),
            cost_estimate=cost,
        )(x_flat, W, b)
    else:
        # ------------------------- K-tiled path ----------------------------
        tk_target = tile_k if tile_k is not None else 2048
        tk = max(128, min(_round_up(tk_target, 128), _round_down_mult(K, 128)))
        n_k = pl.cdiv(K, tk)
        needs_mask = (K % tk) != 0
        w_tile_bytes = 2 * tk * N * w_isz
        tb = pick_tile_b(2 * (tk * x_isz + out_row),
                         w_tile_bytes + 2 * b_bytes, tk)
        grid = (pl.cdiv(B, tb), n_k)            # reduction axis last
        exact = (2 * tb * tk * x_isz + w_tile_bytes + 2 * b_bytes
                 + 2 * tb * out_row)
        vmem_limit = int(min(max(exact + 4 * 1024 * 1024, 32 * 1024 * 1024),
                             int(vmem_cap * 0.9)))

        kernel = _make_ktiled_kernel(K, tk, needs_mask)
        out = pl.pallas_call(
            kernel,
            out_shape=jax.ShapeDtypeStruct((B, N), jnp.float32),
            grid=grid,
            in_specs=[
                pl.BlockSpec((tb, tk), lambda i, k: (i, k)),   # x tile
                pl.BlockSpec((tk, N), lambda i, k: (k, 0)),    # W K-slab
                pl.BlockSpec((1, N), lambda i, k: (0, 0)),     # bias
            ],
            out_specs=pl.BlockSpec((tb, N), lambda i, k: (i, 0)),
            compiler_params=pltpu.CompilerParams(
                dimension_semantics=("parallel", "arbitrary"),
                vmem_limit_bytes=vmem_limit,
            ),
            cost_estimate=cost,
        )(x_flat, W, b)

    # torch .squeeze(): drops all size-1 dims (incl. batch when B == 1).
    return jnp.squeeze(out)


# ----------------------------------------------------------------------------
# Init + pure-JAX reference (mirrors the PyTorch forward) for validation
# ----------------------------------------------------------------------------
def init_params(key, num_concepts, x_dim, num_hidden_concept):
    """Deterministic init mimicking the module's __init__ shapes:
    concepts 0..C-1: Linear((C-1)*x_dim, 1); hidden: Linear(C*x_dim, 1)."""
    weights, biases = [], []
    n_total = num_concepts + num_hidden_concept
    for i in range(n_total):
        in_dim = ((num_concepts - 1) * x_dim if i < num_concepts
                  else num_concepts * x_dim)
        key, kw, kb = jax.random.split(key, 3)
        bound = 1.0 / jnp.sqrt(in_dim)
        weights.append(jax.random.uniform(kw, (in_dim,), jnp.float32, -bound, bound))
        biases.append(jax.random.uniform(kb, (), jnp.float32, -bound, bound))
    return weights, biases


def reference_forward(x, weights, biases, num_hidden_concept):
    B, C, D = x.shape
    probs = []
    for i in range(C + num_hidden_concept):
        if i < C:
            x_except_i = jnp.concatenate([x[:, :i, :], x[:, i + 1:, :]], axis=1)
        else:
            x_except_i = x
        x_flat = x_except_i.reshape(B, -1)
        probs.append(x_flat @ weights[i] + biases[i])   # (B,)
    return jnp.squeeze(jnp.stack(probs, axis=1))


# TODO(synk): the training path (step(): RMSprop + BCE/MSE backward) is host-side
# optimizer logic, not part of the forward kernel, and is not translated.

if __name__ == "__main__":
    key = jax.random.PRNGKey(0)
    k_p, k_x1, k_x2, k_p2, k_x3 = jax.random.split(key, 5)

    # ----- Config A: resident-W path -----
    num_concepts, x_dim, num_hidden = 4, 16, 2          # K = 64, N = 6
    N = num_concepts + num_hidden
    weights, biases = init_params(k_p, num_concepts, x_dim, num_hidden)
    W32, b32, _ = prepare_params(weights, biases, num_concepts, x_dim, num_hidden)

    x1 = jax.random.normal(k_x1, (2, num_concepts, x_dim), jnp.float32)
    y1 = jax.block_until_ready(concept_pred_forward(x1, W32, b32))
    y1_ref = reference_forward(x1, weights, biases, num_hidden)
    assert y1.shape == (2, N), y1.shape
    assert jnp.allclose(y1, y1_ref, atol=1e-5, rtol=1e-5), (y1, y1_ref)

    # Multi-step batch grid + partial edge block.
    x2 = jax.random.normal(k_x2, (20, num_concepts, x_dim), jnp.float32)
    y2 = jax.block_until_ready(concept_pred_forward(x2, W32, b32, tile_b=8))
    y2_ref = reference_forward(x2, weights, biases, num_hidden)
    assert y2.shape == (20, N), y2.shape
    assert jnp.allclose(y2, y2_ref, atol=1e-5, rtol=1e-5), (y2, y2_ref)

    # bf16 W path: x stays f32 in HBM, cast happens in-kernel (no extra HBM pass).
    Wbf, bbf, _ = prepare_params(weights, biases, num_concepts, x_dim, num_hidden,
                                 compute_dtype=jnp.bfloat16)
    y3 = jax.block_until_ready(concept_pred_forward(x2, Wbf, bbf, tile_b=8))
    assert jnp.allclose(y3, y2_ref, atol=5e-2, rtol=5e-2), (y3, y2_ref)

    # ----- Config B: K-tiled reduction path (forced), partial K block masked -----
    C2, D2, H2 = 4, 48, 2                               # K = 192, N = 6
    weights2, biases2 = init_params(k_p2, C2, D2, H2)
    W2, b2v, _ = prepare_params(weights2, biases2, C2, D2, H2)
    x3 = jax.random.normal(k_x3, (20, C2, D2), jnp.float32)
    y4 = jax.block_until_ready(
        concept_pred_forward(x3, W2, b2v, tile_b=8, tile_k=128,
                             force_k_tiling=True))
    y4_ref = reference_forward(x3, weights2, biases2, H2)
    assert y4.shape == (20, C2 + H2), y4.shape
    assert jnp.allclose(y4, y4_ref, atol=1e-4, rtol=1e-4), (y4, y4_ref)

    print("KERNEL_OK")
</pallas_src>

<mosaic_0001>
module attributes {stable_mosaic.version = 11 : i64} {
  func.func @_resident_kernel(%arg0: i32, %arg1: memref<2x64xf32, #tpu.memory_space<vmem>>, %arg2: memref<64x6xf32, #tpu.memory_space<vmem>>, %arg3: memref<1x6xf32, #tpu.memory_space<vmem>>, %arg4: memref<2x6xf32, #tpu.memory_space<vmem>>) attributes {dimension_semantics = [#tpu.dimension_semantics<parallel>], iteration_bounds = array<i64: 1>, scalar_prefetch = 0 : i64, scratch_operands = 0 : i64, tpu.core_type = #tpu.core_type<tc>, window_params = [{transform_indices = @transform_0, window_bounds = array<i64: 2, 64>}, {pipeline_mode = #tpu.pipeline_mode<synchronous>, transform_indices = @transform_1, window_bounds = array<i64: 64, 6>}, {pipeline_mode = #tpu.pipeline_mode<synchronous>, transform_indices = @transform_2, window_bounds = array<i64: 1, 6>}, {transform_indices = @transform_3, window_bounds = array<i64: 2, 6>}]} {
    %c0 = arith.constant 0 : index
    %c0_0 = arith.constant 0 : index
    %0 = vector.load %arg1[%c0, %c0_0] : memref<2x64xf32, #tpu.memory_space<vmem>>, vector<2x64xf32>
    %c0_1 = arith.constant 0 : index
    %c0_2 = arith.constant 0 : index
    %1 = vector.load %arg2[%c0_1, %c0_2] : memref<64x6xf32, #tpu.memory_space<vmem>>, vector<64x6xf32>
    %cst = arith.constant dense<0.000000e+00> : vector<2x6xf32>
    %2 = tpu.matmul %0, %1, %cst {dimension_numbers = #tpu.dot_dimension_numbers<[1], [0], [0], [1], [0, 0, 1, 1], [], []>} : vector<2x64xf32>, vector<64x6xf32>, vector<2x6xf32> -> vector<2x6xf32>
    %c0_3 = arith.constant 0 : index
    %c0_4 = arith.constant 0 : index
    %3 = vector.load %arg3[%c0_3, %c0_4] : memref<1x6xf32, #tpu.memory_space<vmem>>, vector<1x6xf32>
    %4 = vector.broadcast %3 : vector<1x6xf32> to vector<2x6xf32>
    %5 = arith.addf %2, %4 : vector<2x6xf32>
    %c0_5 = arith.constant 0 : index
    %c0_6 = arith.constant 0 : index
    %6 = vector.load %arg4[%c0_5, %c0_6] : memref<2x6xf32, #tpu.memory_space<vmem>>, vector<2x6xf32>
    tpu.vector_store %arg4[%c0_5, %c0_6], %5 {strides = array<i32>} : memref<2x6xf32, #tpu.memory_space<vmem>>, vector<2x6xf32>,
    return
  }
  func.func @transform_0(%arg0: i32) -> (i32, i32) {
    %c0_i32 = arith.constant 0 : i32
    %c0_i32_0 = arith.constant 0 : i32
    return %arg0, %c0_i32 : i32, i32
  }
  func.func @transform_1(%arg0: i32) -> (i32, i32) {
    %c0_i32 = arith.constant 0 : i32
    %c0_i32_0 = arith.constant 0 : i32
    %c0_i32_1 = arith.constant 0 : i32
    return %c0_i32, %c0_i32_0 : i32, i32
  }
  func.func @transform_2(%arg0: i32) -> (i32, i32) {
    %c0_i32 = arith.constant 0 : i32
    %c0_i32_0 = arith.constant 0 : i32
    %c0_i32_1 = arith.constant 0 : i32
    return %c0_i32, %c0_i32_0 : i32, i32
  }
  func.func @transform_3(%arg0: i32) -> (i32, i32) {
    %c0_i32 = arith.constant 0 : i32
    %c0_i32_0 = arith.constant 0 : i32
    return %arg0, %c0_i32 : i32, i32
  }
}

</mosaic_0001>

<llo_original>
// kernel: tpu_custom_call.1
$region0: #{tpu_custom_call.1}
  #allocation0 [shape = 'u32[]', space=smem, size = 0x4, offset = 0x4, fixed_abs, tag = 'smem constant byte address 0x4 - core index']
  #allocation1 [shape = 'u32[72,128]{1,0:T(1,128)}', space=vmem, size = 0x9000, scoped, tag = 'internal scratch']
  %s0 = inlined_call_operand.vmem [shape: f32[2,64], index: 0, kind: input, shape index: {}]
  %s1 = inlined_call_operand.vmem [shape: f32[64,6], index: 1, kind: input, shape index: {}]
  %s2 = inlined_call_operand.vmem [shape: f32[1,6], index: 2, kind: input, shape index: {}]
  %s3 = inlined_call_operand.hbm [shape: f32[2,6], index: 3, kind: output, shape index: {}]
  %s4 = sld [smem:[#allocation0]]
  $region22: #{tpu_custom_call.1} parent=0
    _
  %s6 = ssub.s32 1, %s4
  %s7 = scalar_select 0, %s6, %s4
  $region1: #{tpu_custom_call.1} parent=0
    #allocation2 [shape = 'u8[1024]{0}', space=vmem, size = 0x400, scoped, tag = 'output window, operand 0, single buffered']
    #allocation3 [shape = 's32[1]{0}', space=sflag, size = 0x4, scoped, tag = 'scoped memory for tpu_custom_call.1']
    %8 = vsyncpa [#allocation3], 0
    // Predicated region
    $region2: #{tpu_custom_call.1} parent=1 // pred_check
      _
    $region3: #{tpu_custom_call.1} parent=1 // pred_check_branch
      %10 = sbr.rel (0) target = $region5
    $region4: #{tpu_custom_call.1} parent=1 // pred_region
      _
    $region5: #{tpu_custom_call.1} parent=1 // pred_fallthru
      _
    // Predicated region
    $region6: #{tpu_custom_call.1} parent=1 // pred_check
      _
    $region7: #{tpu_custom_call.1} parent=1 // pred_check_branch
      %12 = sbr.rel (0) target = $region9
    $region8: #{tpu_custom_call.1} parent=1 // pred_region
      _
    $region9: #{tpu_custom_call.1} parent=1 // pred_fallthru
      _
    // Predicated region
    $region10: #{tpu_custom_call.1} parent=1 // pred_check
      _
    $region11: #{tpu_custom_call.1} parent=1 // pred_check_branch
      %14 = sbr.rel (0) target = $region13
    $region12: #{tpu_custom_call.1} parent=1 // pred_region
      _
    $region13: #{tpu_custom_call.1} parent=1 // pred_fallthru
      _
    %v15 = vld [vmem:[%s0] sm:$0x3]
    %v16 = vld [vmem:[%s1] sm:$0xff]
    %v17 = vld [vmem:[%s1 + $0x8] sm:$0xff]
    %v18 = vld [vmem:[%s1 + $0x10] sm:$0xff]
    %v19 = vld [vmem:[%s1 + $0x18] sm:$0xff]
    %v20 = vld [vmem:[%s1 + $0x20] sm:$0xff]
    %v21 = vld [vmem:[%s1 + $0x28] sm:$0xff]
    %v22 = vld [vmem:[%s1 + $0x30] sm:$0xff]
    %v23 = vld [vmem:[%s1 + $0x38] sm:$0xff]
    %v24 = vld [vmem:[%s2] sm:$0x1]
    %v26 = vperm.slane %v24, 0
    %vm28 = vcmask 523264
    %v30 = vsel %vm28, %v15, 0
    %32 = vmatpush.msra.mxu0 0.0
    %33 = vmatpush.msra.mxu0 0.0
    %34 = vmatpush.msra.mxu0 0.0
    %35 = vmatpush.msra.mxu0 0.0
    %36 = vmatpush.msra.mxu0 0.0
    %37 = vmatpush.msra.mxu0 0.0
    %38 = vmatpush.msra.mxu0 0.0
    %39 = vmatpush.msra.mxu0 0.0
    %40 = vmatpush.msra.mxu0 %v23
    %41 = vmatpush.msra.mxu0 %v22
    %42 = vmatpush.msra.mxu0 %v21
    %43 = vmatpush.msra.mxu0 %v20
    %44 = vmatpush.msra.mxu0 %v19
    %45 = vmatpush.msra.mxu0 %v18
    %46 = vmatpush.msra.mxu0 %v17
    %47 = vmatpush.msra.mxu0 %v16
    %48 = vmatmul.f32.gmra.mxu0 %v30
    %v49 = vpop.f32.mrf.mxu0
    %v50 = vadd.f32 %v26, %v49
    %51 = vdwg.mxu0
    %vm52 = vcmask 41984
    %53 = vst.msk [vmem:[#allocation2] sm:$0x3] %vm52, %v50
    // Predicated region
    $region14: #{tpu_custom_call.1} parent=1 // pred_check
      _
    $region15: #{tpu_custom_call.1} parent=1 // pred_check_branch
      %55 = sbr.rel (0) target = $region17
    $region16: #{tpu_custom_call.1} parent=1 // pred_region
      %57 = vsyncadd [#allocation3], 0
      %s59 = sshll.u32 [#allocation2], 4
      %s60 = int_to_ptr.vmem [resolvable:$true] %s59
      %s61 = sshll.u32 %s3, 4
      %s62 = int_to_ptr.hbm [resolvable:$true] %s61
      %64 = dma.vmem_to_hbm [thread:$0]  %s60, 32, %s62, [#allocation3]
    $region17: #{tpu_custom_call.1} parent=1 // pred_fallthru
      _
    // Predicated region
    $region18: #{tpu_custom_call.1} parent=1 // pred_check
      _
    $region19: #{tpu_custom_call.1} parent=1 // pred_check_branch
      %66 = sbr.rel (0) target = $region21
    $region20: #{tpu_custom_call.1} parent=1 // pred_region
      %68 = dma.done [#allocation3], 32
    $region21: #{tpu_custom_call.1} parent=1 // pred_fallthru
      _
    %69 = vsyncpa [#allocation3], 1

</llo_original>
